<compile_context>
chip_gen: v7x
topology: tpu7x:2x2x1
jax: 0.10.0
libtpu: 0.0.40
codegen_flags: <defaults>
</compile_context>

<pallas_src>
import functools

import jax
import jax.numpy as jnp
from jax.experimental import pallas as pl
from jax.experimental.pallas import tpu as pltpu

C1 = 0.01 ** 2
C2 = 0.03 ** 2


def _ssim_kernel(x_ref, y_ref, out_ref, pad_ref, *, approx_recip):
    """x_ref / y_ref: (B, H, W) unpadded tiles; out_ref: (B, H, W);
    pad_ref: (B, H+2, W+2) f32 VMEM scratch reused for every pooled map."""
    _, H, W = x_ref.shape

    x = x_ref[...].astype(jnp.float32)
    y = y_ref[...].astype(jnp.float32)

    def pool9(a):
        # 9 * AvgPool2d(3, stride=1)(ReflectionPad2d(1)(a)), computed as a
        # separable 3-tap sum over a reflect-padded plane built in VMEM.
        pad_ref[:, 1:H + 1, 1:W + 1] = a
        pad_ref[:, 1:H + 1, 0:1] = a[:, :, 1:2]              # left reflect col
        pad_ref[:, 1:H + 1, W + 1:W + 2] = a[:, :, W - 2:W - 1]  # right reflect col
        # Top/bottom reflected rows copied AFTER the column fill so the four
        # corners come out correct (corner = a[1, 1] etc.).
        pad_ref[:, 0:1, :] = pad_ref[:, 2:3, :]
        pad_ref[:, H + 1:H + 2, :] = pad_ref[:, H - 1:H, :]

        p = pad_ref[...]
        rw = p[:, :, 0:W] + p[:, :, 1:W + 1] + p[:, :, 2:W + 2]      # (B, H+2, W)
        return rw[:, 0:H, :] + rw[:, 1:H + 1, :] + rw[:, 2:H + 2, :]  # (B, H, W)

    # Pooled raw 3x3 sums.  Each product plane dies right after its pool.
    s_xy = pool9(x * y)
    s_qq = pool9(x * x + y * y)   # pooled (x^2 + y^2) in a single pass
    s_x = pool9(x)
    s_y = pool9(y)

    # SSIM with the 1/9 pooling normalisation folded into the constants:
    # multiply numerator and denominator by 81^2 (ratio unchanged).
    c1 = jnp.float32(81.0 * C1)
    c2 = jnp.float32(81.0 * C2)

    sx2 = s_x * s_x
    sy2 = s_y * s_y
    two_sxsy = s_x * s_y
    two_sxsy = two_sxsy + two_sxsy
    mu2 = sx2 + sy2

    num = (two_sxsy + c1) * (18.0 * s_xy + c2 - two_sxsy)
    den = (mu2 + c1) * (9.0 * s_qq + c2 - mu2)

    if approx_recip:
        # EUP reciprocal (~1e-3 rel. error) - only when explicitly requested.
        ratio = num * pl.reciprocal(den, approx=True)
    else:
        ratio = num / den

    out = jnp.clip(0.5 - 0.5 * ratio, 0.0, 1.0)
    out_ref[...] = out.astype(out_ref.dtype)


def _vmem_capacity_bytes():
    """Trace-time VMEM capacity query with a conservative (v7x-sized) fallback."""
    try:
        return int(pltpu.get_tpu_info().vmem_capacity_bytes)
    except Exception:
        return 64 * 1024 * 1024


def _pick_batch(nc, h, w, in_bytes, out_bytes, budget_bytes, min_steps):
    """Largest divisor of nc whose per-grid-step footprint fits budget_bytes,
    optionally keeping >= min_steps grid steps (DMA/compute overlap per core)."""
    per_slice = (
        2 * 2 * h * w * in_bytes        # x, y input tiles, double-buffered
        + 2 * h * w * out_bytes         # output tile, double-buffered
        + (h + 2) * (w + 2) * 4         # reflection-pad VMEM scratch (f32)
        + 12 * h * w * 4                # f32 working planes (upcasts, pools, temps)
    )
    cap = max(1, budget_bytes // per_slice)
    divisors = [d for d in range(1, nc + 1) if nc % d == 0]
    fits = [d for d in divisors if d <= cap] or [1]
    b = max(fits)
    if min_steps > 1 and nc // b < min_steps:
        stepped = [d for d in fits if nc // d >= min_steps]
        if stepped:
            b = max(stepped)
    return b


@functools.partial(jax.jit, static_argnames=("approx_recip",))
def ssim(x, y, approx_recip=False):
    """x, y: (N, C, H, W) arrays (f32 or bf16). Returns the SSIM loss map in [0, 1]."""
    N, C, H, W = x.shape
    NC = N * C

    xs = x.reshape(NC, H, W)
    ys = y.reshape(NC, H, W)

    cap = _vmem_capacity_bytes()
    budget = int(cap * 0.25)
    vmem_limit = int(cap * 0.70)
    # 64 MiB parts (v7x) have 2 TensorCores: keep >= 4 grid steps (>= 2 per
    # core) so each core gets a prefetch-ahead iteration; on 128 MiB single-TC
    # parts (v5e/v6e) just maximize the tile.
    min_steps = 4 if cap <= 64 * 1024 * 1024 else 1

    B = _pick_batch(NC, H, W, x.dtype.itemsize, x.dtype.itemsize, budget, min_steps)
    grid = (NC // B,)

    kernel = functools.partial(_ssim_kernel, approx_recip=approx_recip)

    out = pl.pallas_call(
        kernel,
        out_shape=jax.ShapeDtypeStruct((NC, H, W), x.dtype),
        grid_spec=pltpu.PrefetchScalarGridSpec(
            num_scalar_prefetch=0,
            grid=grid,
            in_specs=[
                pl.BlockSpec((B, H, W), lambda i: (i, 0, 0)),
                pl.BlockSpec((B, H, W), lambda i: (i, 0, 0)),
            ],
            out_specs=pl.BlockSpec((B, H, W), lambda i: (i, 0, 0)),
            scratch_shapes=[pltpu.VMEM((B, H + 2, W + 2), jnp.float32)],
        ),
        compiler_params=pltpu.CompilerParams(
            dimension_semantics=("parallel",),
            vmem_limit_bytes=vmem_limit,
        ),
    )(xs, ys)

    return out.reshape(N, C, H, W)


def _ssim_ref(x, y):
    """Pure-JAX reference mirroring the PyTorch module."""
    def pad(a):
        return jnp.pad(a, ((0, 0), (0, 0), (1, 1), (1, 1)), mode="reflect")

    def pool(a):
        return jax.lax.reduce_window(
            a, 0.0, jax.lax.add,
            window_dimensions=(1, 1, 3, 3),
            window_strides=(1, 1, 1, 1),
            padding="VALID") / 9.0

    xp, yp = pad(x), pad(y)
    mu_x, mu_y = pool(xp), pool(yp)
    sigma_x = pool(xp ** 2) - mu_x ** 2
    sigma_y = pool(yp ** 2) - mu_y ** 2
    sigma_xy = pool(xp * yp) - mu_x * mu_y
    n = (2 * mu_x * mu_y + C1) * (2 * sigma_xy + C2)
    d = (mu_x ** 2 + mu_y ** 2 + C1) * (sigma_x + sigma_y + C2)
    return jnp.clip((1 - n / d) / 2, 0.0, 1.0)


if __name__ == "__main__":
    key = jax.random.PRNGKey(0)
    kx, ky = jax.random.split(key)
    N, C, H, W = 2, 4, 16, 16
    x = jax.random.uniform(kx, (N, C, H, W), dtype=jnp.float32)
    y = jax.random.uniform(ky, (N, C, H, W), dtype=jnp.float32)

    out = ssim(x, y)
    jax.block_until_ready(out)

    ref = _ssim_ref(x, y)
    assert out.shape == (N, C, H, W)
    # The kernel folds the 1/9 pooling normalisation into the SSIM constants
    # (x81 scaling); intermediates stay f32 but round slightly differently from
    # the /9 reference, so the comparison tolerance is deliberately 1e-4
    # (see perf-review correctness note). Typical max |diff| is ~1e-6..1e-5.
    err = float(jnp.max(jnp.abs(out - ref)))
    assert jnp.allclose(out, ref, atol=1e-4, rtol=1e-4), err

    print("KERNEL_OK")
</pallas_src>

<mosaic_0001>
module attributes {stable_mosaic.version = 11 : i64} {
  func.func @_ssim_kernel(%arg0: i32, %arg1: memref<2x16x16xf32, #tpu.memory_space<vmem>>, %arg2: memref<2x16x16xf32, #tpu.memory_space<vmem>>, %arg3: memref<2x16x16xf32, #tpu.memory_space<vmem>>, %arg4: memref<2x18x18xf32, #tpu.memory_space<vmem>>) attributes {dimension_semantics = [#tpu.dimension_semantics<parallel>], iteration_bounds = array<i64: 4>, scalar_prefetch = 0 : i64, scratch_operands = 1 : i64, tpu.core_type = #tpu.core_type<tc>, window_params = [{transform_indices = @transform_0, window_bounds = array<i64: 2, 16, 16>}, {transform_indices = @transform_1, window_bounds = array<i64: 2, 16, 16>}, {transform_indices = @transform_2, window_bounds = array<i64: 2, 16, 16>}]} {
    %c0 = arith.constant 0 : index
    %c0_0 = arith.constant 0 : index
    %c0_1 = arith.constant 0 : index
    %0 = vector.load %arg1[%c0, %c0_0, %c0_1] : memref<2x16x16xf32, #tpu.memory_space<vmem>>, vector<2x16x16xf32>
    %c0_2 = arith.constant 0 : index
    %c0_3 = arith.constant 0 : index
    %c0_4 = arith.constant 0 : index
    %1 = vector.load %arg2[%c0_2, %c0_3, %c0_4] : memref<2x16x16xf32, #tpu.memory_space<vmem>>, vector<2x16x16xf32>
    %2 = arith.mulf %0, %1 : vector<2x16x16xf32>
    %c0_5 = arith.constant 0 : index
    %c1 = arith.constant 1 : index
    %c1_6 = arith.constant 1 : index
    %3 = vector.load %arg4[%c0_5, %c1, %c1_6] : memref<2x18x18xf32, #tpu.memory_space<vmem>>, vector<2x16x16xf32>
    tpu.vector_store %arg4[%c0_5, %c1, %c1_6], %2 {strides = array<i32>} : memref<2x18x18xf32, #tpu.memory_space<vmem>>, vector<2x16x16xf32>,
    %4 = vector.extract_strided_slice %2 {offsets = [0, 0, 1], sizes = [2, 16, 1], strides = [1, 1, 1]} : vector<2x16x16xf32> to vector<2x16x1xf32>
    %c0_7 = arith.constant 0 : index
    %c1_8 = arith.constant 1 : index
    %c0_9 = arith.constant 0 : index
    %5 = vector.load %arg4[%c0_7, %c1_8, %c0_9] : memref<2x18x18xf32, #tpu.memory_space<vmem>>, vector<2x16x1xf32>
    tpu.vector_store %arg4[%c0_7, %c1_8, %c0_9], %4 {strides = array<i32>} : memref<2x18x18xf32, #tpu.memory_space<vmem>>, vector<2x16x1xf32>,
    %6 = vector.extract_strided_slice %2 {offsets = [0, 0, 14], sizes = [2, 16, 1], strides = [1, 1, 1]} : vector<2x16x16xf32> to vector<2x16x1xf32>
    %c0_10 = arith.constant 0 : index
    %c1_11 = arith.constant 1 : index
    %c17 = arith.constant 17 : index
    %7 = vector.load %arg4[%c0_10, %c1_11, %c17] : memref<2x18x18xf32, #tpu.memory_space<vmem>>, vector<2x16x1xf32>
    tpu.vector_store %arg4[%c0_10, %c1_11, %c17], %6 {strides = array<i32>} : memref<2x18x18xf32, #tpu.memory_space<vmem>>, vector<2x16x1xf32>,
    %c0_12 = arith.constant 0 : index
    %c2 = arith.constant 2 : index
    %c0_13 = arith.constant 0 : index
    %8 = vector.load %arg4[%c0_12, %c2, %c0_13] : memref<2x18x18xf32, #tpu.memory_space<vmem>>, vector<2x1x18xf32>
    %c0_14 = arith.constant 0 : index
    %c0_15 = arith.constant 0 : index
    %c0_16 = arith.constant 0 : index
    %9 = vector.load %arg4[%c0_14, %c0_15, %c0_16] : memref<2x18x18xf32, #tpu.memory_space<vmem>>, vector<2x1x18xf32>
    tpu.vector_store %arg4[%c0_14, %c0_15, %c0_16], %8 {strides = array<i32>} : memref<2x18x18xf32, #tpu.memory_space<vmem>>, vector<2x1x18xf32>,
    %c0_17 = arith.constant 0 : index
    %c15 = arith.constant 15 : index
    %c0_18 = arith.constant 0 : index
    %10 = vector.load %arg4[%c0_17, %c15, %c0_18] : memref<2x18x18xf32, #tpu.memory_space<vmem>>, vector<2x1x18xf32>
    %c0_19 = arith.constant 0 : index
    %c17_20 = arith.constant 17 : index
    %c0_21 = arith.constant 0 : index
    %11 = vector.load %arg4[%c0_19, %c17_20, %c0_21] : memref<2x18x18xf32, #tpu.memory_space<vmem>>, vector<2x1x18xf32>
    tpu.vector_store %arg4[%c0_19, %c17_20, %c0_21], %10 {strides = array<i32>} : memref<2x18x18xf32, #tpu.memory_space<vmem>>, vector<2x1x18xf32>,
    %c0_22 = arith.constant 0 : index
    %c0_23 = arith.constant 0 : index
    %c0_24 = arith.constant 0 : index
    %12 = vector.load %arg4[%c0_22, %c0_23, %c0_24] : memref<2x18x18xf32, #tpu.memory_space<vmem>>, vector<2x18x18xf32>
    %13 = vector.extract_strided_slice %12 {offsets = [0, 0, 0], sizes = [2, 18, 16], strides = [1, 1, 1]} : vector<2x18x18xf32> to vector<2x18x16xf32>
    %14 = vector.extract_strided_slice %12 {offsets = [0, 0, 1], sizes = [2, 18, 16], strides = [1, 1, 1]} : vector<2x18x18xf32> to vector<2x18x16xf32>
    %15 = arith.addf %13, %14 : vector<2x18x16xf32>
    %16 = vector.extract_strided_slice %12 {offsets = [0, 0, 2], sizes = [2, 18, 16], strides = [1, 1, 1]} : vector<2x18x18xf32> to vector<2x18x16xf32>
    %17 = arith.addf %15, %16 : vector<2x18x16xf32>
    %18 = vector.extract_strided_slice %17 {offsets = [0, 0, 0], sizes = [2, 16, 16], strides = [1, 1, 1]} : vector<2x18x16xf32> to vector<2x16x16xf32>
    %19 = vector.extract_strided_slice %17 {offsets = [0, 1, 0], sizes = [2, 16, 16], strides = [1, 1, 1]} : vector<2x18x16xf32> to vector<2x16x16xf32>
    %20 = arith.addf %18, %19 : vector<2x16x16xf32>
    %21 = vector.extract_strided_slice %17 {offsets = [0, 2, 0], sizes = [2, 16, 16], strides = [1, 1, 1]} : vector<2x18x16xf32> to vector<2x16x16xf32>
    %22 = arith.addf %20, %21 : vector<2x16x16xf32>
    %23 = arith.mulf %0, %0 : vector<2x16x16xf32>
    %24 = arith.mulf %1, %1 : vector<2x16x16xf32>
    %25 = arith.addf %23, %24 : vector<2x16x16xf32>
    %c0_25 = arith.constant 0 : index
    %c1_26 = arith.constant 1 : index
    %c1_27 = arith.constant 1 : index
    %26 = vector.load %arg4[%c0_25, %c1_26, %c1_27] : memref<2x18x18xf32, #tpu.memory_space<vmem>>, vector<2x16x16xf32>
    tpu.vector_store %arg4[%c0_25, %c1_26, %c1_27], %25 {strides = array<i32>} : memref<2x18x18xf32, #tpu.memory_space<vmem>>, vector<2x16x16xf32>,
    %27 = vector.extract_strided_slice %25 {offsets = [0, 0, 1], sizes = [2, 16, 1], strides = [1, 1, 1]} : vector<2x16x16xf32> to vector<2x16x1xf32>
    %c0_28 = arith.constant 0 : index
    %c1_29 = arith.constant 1 : index
    %c0_30 = arith.constant 0 : index
    %28 = vector.load %arg4[%c0_28, %c1_29, %c0_30] : memref<2x18x18xf32, #tpu.memory_space<vmem>>, vector<2x16x1xf32>
    tpu.vector_store %arg4[%c0_28, %c1_29, %c0_30], %27 {strides = array<i32>} : memref<2x18x18xf32, #tpu.memory_space<vmem>>, vector<2x16x1xf32>,
    %29 = vector.extract_strided_slice %25 {offsets = [0, 0, 14], sizes = [2, 16, 1], strides = [1, 1, 1]} : vector<2x16x16xf32> to vector<2x16x1xf32>
    %c0_31 = arith.constant 0 : index
    %c1_32 = arith.constant 1 : index
    %c17_33 = arith.constant 17 : index
    %30 = vector.load %arg4[%c0_31, %c1_32, %c17_33] : memref<2x18x18xf32, #tpu.memory_space<vmem>>, vector<2x16x1xf32>
    tpu.vector_store %arg4[%c0_31, %c1_32, %c17_33], %29 {strides = array<i32>} : memref<2x18x18xf32, #tpu.memory_space<vmem>>, vector<2x16x1xf32>,
    %c0_34 = arith.constant 0 : index
    %c2_35 = arith.constant 2 : index
    %c0_36 = arith.constant 0 : index
    %31 = vector.load %arg4[%c0_34, %c2_35, %c0_36] : memref<2x18x18xf32, #tpu.memory_space<vmem>>, vector<2x1x18xf32>
    %c0_37 = arith.constant 0 : index
    %c0_38 = arith.constant 0 : index
    %c0_39 = arith.constant 0 : index
    %32 = vector.load %arg4[%c0_37, %c0_38, %c0_39] : memref<2x18x18xf32, #tpu.memory_space<vmem>>, vector<2x1x18xf32>
    tpu.vector_store %arg4[%c0_37, %c0_38, %c0_39], %31 {strides = array<i32>} : memref<2x18x18xf32, #tpu.memory_space<vmem>>, vector<2x1x18xf32>,
    %c0_40 = arith.constant 0 : index
    %c15_41 = arith.constant 15 : index
    %c0_42 = arith.constant 0 : index
    %33 = vector.load %arg4[%c0_40, %c15_41, %c0_42] : memref<2x18x18xf32, #tpu.memory_space<vmem>>, vector<2x1x18xf32>
    %c0_43 = arith.constant 0 : index
    %c17_44 = arith.constant 17 : index
    %c0_45 = arith.constant 0 : index
    %34 = vector.load %arg4[%c0_43, %c17_44, %c0_45] : memref<2x18x18xf32, #tpu.memory_space<vmem>>, vector<2x1x18xf32>
    tpu.vector_store %arg4[%c0_43, %c17_44, %c0_45], %33 {strides = array<i32>} : memref<2x18x18xf32, #tpu.memory_space<vmem>>, vector<2x1x18xf32>,
    %c0_46 = arith.constant 0 : index
    %c0_47 = arith.constant 0 : index
    %c0_48 = arith.constant 0 : index
    %35 = vector.load %arg4[%c0_46, %c0_47, %c0_48] : memref<2x18x18xf32, #tpu.memory_space<vmem>>, vector<2x18x18xf32>
    %36 = vector.extract_strided_slice %35 {offsets = [0, 0, 0], sizes = [2, 18, 16], strides = [1, 1, 1]} : vector<2x18x18xf32> to vector<2x18x16xf32>
    %37 = vector.extract_strided_slice %35 {offsets = [0, 0, 1], sizes = [2, 18, 16], strides = [1, 1, 1]} : vector<2x18x18xf32> to vector<2x18x16xf32>
    %38 = arith.addf %36, %37 : vector<2x18x16xf32>
    %39 = vector.extract_strided_slice %35 {offsets = [0, 0, 2], sizes = [2, 18, 16], strides = [1, 1, 1]} : vector<2x18x18xf32> to vector<2x18x16xf32>
    %40 = arith.addf %38, %39 : vector<2x18x16xf32>
    %41 = vector.extract_strided_slice %40 {offsets = [0, 0, 0], sizes = [2, 16, 16], strides = [1, 1, 1]} : vector<2x18x16xf32> to vector<2x16x16xf32>
    %42 = vector.extract_strided_slice %40 {offsets = [0, 1, 0], sizes = [2, 16, 16], strides = [1, 1, 1]} : vector<2x18x16xf32> to vector<2x16x16xf32>
    %43 = arith.addf %41, %42 : vector<2x16x16xf32>
    %44 = vector.extract_strided_slice %40 {offsets = [0, 2, 0], sizes = [2, 16, 16], strides = [1, 1, 1]} : vector<2x18x16xf32> to vector<2x16x16xf32>
    %45 = arith.addf %43, %44 : vector<2x16x16xf32>
    %c0_49 = arith.constant 0 : index
    %c1_50 = arith.constant 1 : index
    %c1_51 = arith.constant 1 : index
    %46 = vector.load %arg4[%c0_49, %c1_50, %c1_51] : memref<2x18x18xf32, #tpu.memory_space<vmem>>, vector<2x16x16xf32>
    tpu.vector_store %arg4[%c0_49, %c1_50, %c1_51], %0 {strides = array<i32>} : memref<2x18x18xf32, #tpu.memory_space<vmem>>, vector<2x16x16xf32>,
    %47 = vector.extract_strided_slice %0 {offsets = [0, 0, 1], sizes = [2, 16, 1], strides = [1, 1, 1]} : vector<2x16x16xf32> to vector<2x16x1xf32>
    %c0_52 = arith.constant 0 : index
    %c1_53 = arith.constant 1 : index
    %c0_54 = arith.constant 0 : index
    %48 = vector.load %arg4[%c0_52, %c1_53, %c0_54] : memref<2x18x18xf32, #tpu.memory_space<vmem>>, vector<2x16x1xf32>
    tpu.vector_store %arg4[%c0_52, %c1_53, %c0_54], %47 {strides = array<i32>} : memref<2x18x18xf32, #tpu.memory_space<vmem>>, vector<2x16x1xf32>,
    %49 = vector.extract_strided_slice %0 {offsets = [0, 0, 14], sizes = [2, 16, 1], strides = [1, 1, 1]} : vector<2x16x16xf32> to vector<2x16x1xf32>
    %c0_55 = arith.constant 0 : index
    %c1_56 = arith.constant 1 : index
    %c17_57 = arith.constant 17 : index
    %50 = vector.load %arg4[%c0_55, %c1_56, %c17_57] : memref<2x18x18xf32, #tpu.memory_space<vmem>>, vector<2x16x1xf32>
    tpu.vector_store %arg4[%c0_55, %c1_56, %c17_57], %49 {strides = array<i32>} : memref<2x18x18xf32, #tpu.memory_space<vmem>>, vector<2x16x1xf32>,
    %c0_58 = arith.constant 0 : index
    %c2_59 = arith.constant 2 : index
    %c0_60 = arith.constant 0 : index
    %51 = vector.load %arg4[%c0_58, %c2_59, %c0_60] : memref<2x18x18xf32, #tpu.memory_space<vmem>>, vector<2x1x18xf32>
    %c0_61 = arith.constant 0 : index
    %c0_62 = arith.constant 0 : index
    %c0_63 = arith.constant 0 : index
    %52 = vector.load %arg4[%c0_61, %c0_62, %c0_63] : memref<2x18x18xf32, #tpu.memory_space<vmem>>, vector<2x1x18xf32>
    tpu.vector_store %arg4[%c0_61, %c0_62, %c0_63], %51 {strides = array<i32>} : memref<2x18x18xf32, #tpu.memory_space<vmem>>, vector<2x1x18xf32>,
    %c0_64 = arith.constant 0 : index
    %c15_65 = arith.constant 15 : index
    %c0_66 = arith.constant 0 : index
    %53 = vector.load %arg4[%c0_64, %c15_65, %c0_66] : memref<2x18x18xf32, #tpu.memory_space<vmem>>, vector<2x1x18xf32>
    %c0_67 = arith.constant 0 : index
    %c17_68 = arith.constant 17 : index
    %c0_69 = arith.constant 0 : index
    %54 = vector.load %arg4[%c0_67, %c17_68, %c0_69] : memref<2x18x18xf32, #tpu.memory_space<vmem>>, vector<2x1x18xf32>
    tpu.vector_store %arg4[%c0_67, %c17_68, %c0_69], %53 {strides = array<i32>} : memref<2x18x18xf32, #tpu.memory_space<vmem>>, vector<2x1x18xf32>,
    %c0_70 = arith.constant 0 : index
    %c0_71 = arith.constant 0 : index
    %c0_72 = arith.constant 0 : index
    %55 = vector.load %arg4[%c0_70, %c0_71, %c0_72] : memref<2x18x18xf32, #tpu.memory_space<vmem>>, vector<2x18x18xf32>
    %56 = vector.extract_strided_slice %55 {offsets = [0, 0, 0], sizes = [2, 18, 16], strides = [1, 1, 1]} : vector<2x18x18xf32> to vector<2x18x16xf32>
    %57 = vector.extract_strided_slice %55 {offsets = [0, 0, 1], sizes = [2, 18, 16], strides = [1, 1, 1]} : vector<2x18x18xf32> to vector<2x18x16xf32>
    %58 = arith.addf %56, %57 : vector<2x18x16xf32>
    %59 = vector.extract_strided_slice %55 {offsets = [0, 0, 2], sizes = [2, 18, 16], strides = [1, 1, 1]} : vector<2x18x18xf32> to vector<2x18x16xf32>
    %60 = arith.addf %58, %59 : vector<2x18x16xf32>
    %61 = vector.extract_strided_slice %60 {offsets = [0, 0, 0], sizes = [2, 16, 16], strides = [1, 1, 1]} : vector<2x18x16xf32> to vector<2x16x16xf32>
    %62 = vector.extract_strided_slice %60 {offsets = [0, 1, 0], sizes = [2, 16, 16], strides = [1, 1, 1]} : vector<2x18x16xf32> to vector<2x16x16xf32>
    %63 = arith.addf %61, %62 : vector<2x16x16xf32>
    %64 = vector.extract_strided_slice %60 {offsets = [0, 2, 0], sizes = [2, 16, 16], strides = [1, 1, 1]} : vector<2x18x16xf32> to vector<2x16x16xf32>
    %65 = arith.addf %63, %64 : vector<2x16x16xf32>
    %c0_73 = arith.constant 0 : index
    %c1_74 = arith.constant 1 : index
    %c1_75 = arith.constant 1 : index
    %66 = vector.load %arg4[%c0_73, %c1_74, %c1_75] : memref<2x18x18xf32, #tpu.memory_space<vmem>>, vector<2x16x16xf32>
    tpu.vector_store %arg4[%c0_73, %c1_74, %c1_75], %1 {strides = array<i32>} : memref<2x18x18xf32, #tpu.memory_space<vmem>>, vector<2x16x16xf32>,
    %67 = vector.extract_strided_slice %1 {offsets = [0, 0, 1], sizes = [2, 16, 1], strides = [1, 1, 1]} : vector<2x16x16xf32> to vector<2x16x1xf32>
    %c0_76 = arith.constant 0 : index
    %c1_77 = arith.constant 1 : index
    %c0_78 = arith.constant 0 : index
    %68 = vector.load %arg4[%c0_76, %c1_77, %c0_78] : memref<2x18x18xf32, #tpu.memory_space<vmem>>, vector<2x16x1xf32>
    tpu.vector_store %arg4[%c0_76, %c1_77, %c0_78], %67 {strides = array<i32>} : memref<2x18x18xf32, #tpu.memory_space<vmem>>, vector<2x16x1xf32>,
    %69 = vector.extract_strided_slice %1 {offsets = [0, 0, 14], sizes = [2, 16, 1], strides = [1, 1, 1]} : vector<2x16x16xf32> to vector<2x16x1xf32>
    %c0_79 = arith.constant 0 : index
    %c1_80 = arith.constant 1 : index
    %c17_81 = arith.constant 17 : index
    %70 = vector.load %arg4[%c0_79, %c1_80, %c17_81] : memref<2x18x18xf32, #tpu.memory_space<vmem>>, vector<2x16x1xf32>
    tpu.vector_store %arg4[%c0_79, %c1_80, %c17_81], %69 {strides = array<i32>} : memref<2x18x18xf32, #tpu.memory_space<vmem>>, vector<2x16x1xf32>,
    %c0_82 = arith.constant 0 : index
    %c2_83 = arith.constant 2 : index
    %c0_84 = arith.constant 0 : index
    %71 = vector.load %arg4[%c0_82, %c2_83, %c0_84] : memref<2x18x18xf32, #tpu.memory_space<vmem>>, vector<2x1x18xf32>
    %c0_85 = arith.constant 0 : index
    %c0_86 = arith.constant 0 : index
    %c0_87 = arith.constant 0 : index
    %72 = vector.load %arg4[%c0_85, %c0_86, %c0_87] : memref<2x18x18xf32, #tpu.memory_space<vmem>>, vector<2x1x18xf32>
    tpu.vector_store %arg4[%c0_85, %c0_86, %c0_87], %71 {strides = array<i32>} : memref<2x18x18xf32, #tpu.memory_space<vmem>>, vector<2x1x18xf32>,
    %c0_88 = arith.constant 0 : index
    %c15_89 = arith.constant 15 : index
    %c0_90 = arith.constant 0 : index
    %73 = vector.load %arg4[%c0_88, %c15_89, %c0_90] : memref<2x18x18xf32, #tpu.memory_space<vmem>>, vector<2x1x18xf32>
    %c0_91 = arith.constant 0 : index
    %c17_92 = arith.constant 17 : index
    %c0_93 = arith.constant 0 : index
    %74 = vector.load %arg4[%c0_91, %c17_92, %c0_93] : memref<2x18x18xf32, #tpu.memory_space<vmem>>, vector<2x1x18xf32>
    tpu.vector_store %arg4[%c0_91, %c17_92, %c0_93], %73 {strides = array<i32>} : memref<2x18x18xf32, #tpu.memory_space<vmem>>, vector<2x1x18xf32>,
    %c0_94 = arith.constant 0 : index
    %c0_95 = arith.constant 0 : index
    %c0_96 = arith.constant 0 : index
    %75 = vector.load %arg4[%c0_94, %c0_95, %c0_96] : memref<2x18x18xf32, #tpu.memory_space<vmem>>, vector<2x18x18xf32>
    %76 = vector.extract_strided_slice %75 {offsets = [0, 0, 0], sizes = [2, 18, 16], strides = [1, 1, 1]} : vector<2x18x18xf32> to vector<2x18x16xf32>
    %77 = vector.extract_strided_slice %75 {offsets = [0, 0, 1], sizes = [2, 18, 16], strides = [1, 1, 1]} : vector<2x18x18xf32> to vector<2x18x16xf32>
    %78 = arith.addf %76, %77 : vector<2x18x16xf32>
    %79 = vector.extract_strided_slice %75 {offsets = [0, 0, 2], sizes = [2, 18, 16], strides = [1, 1, 1]} : vector<2x18x18xf32> to vector<2x18x16xf32>
    %80 = arith.addf %78, %79 : vector<2x18x16xf32>
    %81 = vector.extract_strided_slice %80 {offsets = [0, 0, 0], sizes = [2, 16, 16], strides = [1, 1, 1]} : vector<2x18x16xf32> to vector<2x16x16xf32>
    %82 = vector.extract_strided_slice %80 {offsets = [0, 1, 0], sizes = [2, 16, 16], strides = [1, 1, 1]} : vector<2x18x16xf32> to vector<2x16x16xf32>
    %83 = arith.addf %81, %82 : vector<2x16x16xf32>
    %84 = vector.extract_strided_slice %80 {offsets = [0, 2, 0], sizes = [2, 16, 16], strides = [1, 1, 1]} : vector<2x18x16xf32> to vector<2x16x16xf32>
    %85 = arith.addf %83, %84 : vector<2x16x16xf32>
    %86 = arith.mulf %65, %65 : vector<2x16x16xf32>
    %87 = arith.mulf %85, %85 : vector<2x16x16xf32>
    %88 = arith.mulf %65, %85 : vector<2x16x16xf32>
    %89 = arith.addf %88, %88 : vector<2x16x16xf32>
    %90 = arith.addf %86, %87 : vector<2x16x16xf32>
    %cst = arith.constant 8.100000e-03 : f32
    %91 = vector.broadcast %cst : f32 to vector<2x16x16xf32>
    %92 = arith.addf %89, %91 : vector<2x16x16xf32>
    %cst_97 = arith.constant 1.800000e+01 : f32
    %93 = vector.broadcast %cst_97 : f32 to vector<2x16x16xf32>
    %94 = arith.mulf %93, %22 : vector<2x16x16xf32>
    %cst_98 = arith.constant 7.290000e-02 : f32
    %95 = vector.broadcast %cst_98 : f32 to vector<2x16x16xf32>
    %96 = arith.addf %94, %95 : vector<2x16x16xf32>
    %97 = arith.subf %96, %89 : vector<2x16x16xf32>
    %98 = arith.mulf %92, %97 : vector<2x16x16xf32>
    %cst_99 = arith.constant 8.100000e-03 : f32
    %99 = vector.broadcast %cst_99 : f32 to vector<2x16x16xf32>
    %100 = arith.addf %90, %99 : vector<2x16x16xf32>
    %cst_100 = arith.constant 9.000000e+00 : f32
    %101 = vector.broadcast %cst_100 : f32 to vector<2x16x16xf32>
    %102 = arith.mulf %101, %45 : vector<2x16x16xf32>
    %cst_101 = arith.constant 7.290000e-02 : f32
    %103 = vector.broadcast %cst_101 : f32 to vector<2x16x16xf32>
    %104 = arith.addf %102, %103 : vector<2x16x16xf32>
    %105 = arith.subf %104, %90 : vector<2x16x16xf32>
    %106 = arith.mulf %100, %105 : vector<2x16x16xf32>
    %107 = arith.divf %98, %106 : vector<2x16x16xf32>
    %cst_102 = arith.constant 5.000000e-01 : f32
    %108 = vector.broadcast %cst_102 : f32 to vector<2x16x16xf32>
    %109 = arith.mulf %108, %107 : vector<2x16x16xf32>
    %cst_103 = arith.constant 5.000000e-01 : f32
    %110 = vector.broadcast %cst_103 : f32 to vector<2x16x16xf32>
    %111 = arith.subf %110, %109 : vector<2x16x16xf32>
    %cst_104 = arith.constant 0.000000e+00 : f32
    %cst_105 = arith.constant 1.000000e+00 : f32
    %112 = vector.broadcast %cst_104 : f32 to vector<2x16x16xf32>
    %113 = arith.maximumf %112, %111 : vector<2x16x16xf32>
    %114 = vector.broadcast %cst_105 : f32 to vector<2x16x16xf32>
    %115 = arith.minimumf %114, %113 : vector<2x16x16xf32>
    %c0_106 = arith.constant 0 : index
    %c0_107 = arith.constant 0 : index
    %c0_108 = arith.constant 0 : index
    %116 = vector.load %arg3[%c0_106, %c0_107, %c0_108] : memref<2x16x16xf32, #tpu.memory_space<vmem>>, vector<2x16x16xf32>
    tpu.vector_store %arg3[%c0_106, %c0_107, %c0_108], %115 {strides = array<i32>} : memref<2x16x16xf32, #tpu.memory_space<vmem>>, vector<2x16x16xf32>,
    return
  }
  func.func @transform_0(%arg0: i32) -> (i32, i32, i32) {
    %c0_i32 = arith.constant 0 : i32
    %c0_i32_0 = arith.constant 0 : i32
    %c0_i32_1 = arith.constant 0 : i32
    return %arg0, %c0_i32, %c0_i32_0 : i32, i32, i32
  }
  func.func @transform_1(%arg0: i32) -> (i32, i32, i32) {
    %c0_i32 = arith.constant 0 : i32
    %c0_i32_0 = arith.constant 0 : i32
    %c0_i32_1 = arith.constant 0 : i32
    return %arg0, %c0_i32, %c0_i32_0 : i32, i32, i32
  }
  func.func @transform_2(%arg0: i32) -> (i32, i32, i32) {
    %c0_i32 = arith.constant 0 : i32
    %c0_i32_0 = arith.constant 0 : i32
    %c0_i32_1 = arith.constant 0 : i32
    return %arg0, %c0_i32, %c0_i32_0 : i32, i32, i32
  }
}

</mosaic_0001>

<llo_original>
// kernel: ssim.1
$region0: #{ssim.1}
  #allocation0 [shape = 'u32[]', space=smem, size = 0x4, offset = 0x4, fixed_abs, tag = 'smem constant byte address 0x4 - core index']
  #allocation1 [shape = 'u32[144,128]{1,0:T(1,128)}', space=vmem, size = 0x12000, scoped, tag = 'internal scratch']
  #allocation2 [shape = 'f32[2,18,18]{2,1,0:T(8,128)}', space=vmem, size = 0x6000, scoped, tag = 'scratch operand']
  %s0 = inlined_call_operand.hbm [shape: f32[8,16,16], index: 0, kind: input, shape index: {}]
  %s1 = inlined_call_operand.hbm [shape: f32[8,16,16], index: 1, kind: input, shape index: {}]
  %s2 = inlined_call_operand.hbm [shape: f32[8,16,16], index: 2, kind: output, shape index: {}]
  %s3 = sld [smem:[#allocation0]]
  $region49: #{ssim.1} parent=0
    _
  %s5 = ssub.s32 1, %s3
  %s6 = scalar_select 0, %s5, %s3
  $region1: #{ssim.1} parent=0
    #allocation3 [shape = 'u8[32768]{0}', space=vmem, size = 0x8000, scoped, tag = 'input window, operand 0']
    #allocation4 [shape = 's32[2]{0}', space=sflag, size = 0x8, scoped, tag = 'scoped memory for ssim.1']
    #allocation5 [shape = 's32[2]{0}', space=sflag, size = 0x8, scoped, tag = 'scoped memory for ssim.1']
    #allocation6 [shape = 'u8[32768]{0}', space=vmem, size = 0x8000, scoped, tag = 'input window, operand 1']
    #allocation7 [shape = 's32[2]{0}', space=sflag, size = 0x8, scoped, tag = 'scoped memory for ssim.1']
    #allocation8 [shape = 'u8[32768]{0}', space=vmem, size = 0x8000, scoped, tag = 'output window, operand 0']
    %7 = vsyncpa [#allocation4], 0
    %s8 = scalar_lea.sflag [#allocation4], 1
    %9 = vsyncpa %s8, 0
    %10 = vsyncpa [#allocation7], 0
    %s11 = scalar_lea.sflag [#allocation7], 1
    %12 = vsyncpa %s11, 0
    %13 = vsyncpa [#allocation5], 0
    %s14 = scalar_lea.sflag [#allocation5], 1
    %15 = vsyncpa %s14, 0
    loop: start=0, step=1, limit=6
    $region2: #{ssim.1} parent=1 // loop_pre_header
      _
    $region3: #{ssim.1} parent=1 // loop_header
      %s17 = sphi 0, %s21
      %p18 = scmp.ge.s32.totalorder %s17, 6
      %s27 = sphi 0, %s29
      %s30 = sphi 0, %s27
      %s31 = sphi 0, %s30
      %s47 = sphi 0, %s31
      %s53 = sphi 0, %s55
      %s56 = sphi 0, %s53
      %s57 = sphi 0, %s56
      %s73 = sphi 0, %s57
      %s79 = sphi 0, %s81
      %s82 = sphi 0, %s79
      %s83 = sphi 0, %s82
      %s99 = sphi 0, %s83
    $region4: #{ssim.1} parent=1 // loop_header_branch
      %20 = sbr.rel (%p18) target = $region8
    $region5: #{ssim.1} parent=1 // loop_body
      %s22 = ssub.s32 %s17, 1
      %s23 = ssub.s32 %s17, 2
      %s24 = sadd.s32 %s17, 1
      %s25 = ssub.s32 %s17, %s24
      %p26 = scmp.eq.s32.totalorder %s25, 0
      %s28 = sadd.s32 %s27, 1
      %s29 = scalar_select %p26, %s27, %s28
      %p32 = pneg %p26
      %p33 = scmp.eq.s32.totalorder %s17, 3
      %p34 = por %p32, %p33
      %p35 = scmp.ne.s32.totalorder %s27, %s30
      %p36 = scmp.eq.s32.totalorder %s17, 0
      %p37 = por %p35, %p36
      %p38 = scmp.ne.s32.totalorder %s27, %s30
      %p39 = scmp.eq.s32.totalorder %s22, 3
      %p40 = por %p38, %p39
      %p41 = scmp.ne.s32.totalorder %s30, %s31
      %p42 = scmp.eq.s32.totalorder %s22, 0
      %p43 = por %p41, %p42
      %p44 = scmp.ne.s32.totalorder %s30, %s31
      %p45 = scmp.eq.s32.totalorder %s23, 3
      %p46 = por %p44, %p45
      %p48 = scmp.ne.s32.totalorder %s31, %s47
      %p49 = scmp.eq.s32.totalorder %s23, 0
      %p50 = por %p48, %p49
      %s51 = ssub.s32 %s17, %s24
      %p52 = scmp.eq.s32.totalorder %s51, 0
      %s54 = sadd.s32 %s53, 1
      %s55 = scalar_select %p52, %s53, %s54
      %p58 = pneg %p52
      %p59 = scmp.eq.s32.totalorder %s17, 3
      %p60 = por %p58, %p59
      %p61 = scmp.ne.s32.totalorder %s53, %s56
      %p62 = scmp.eq.s32.totalorder %s17, 0
      %p63 = por %p61, %p62
      %p64 = scmp.ne.s32.totalorder %s53, %s56
      %p65 = scmp.eq.s32.totalorder %s22, 3
      %p66 = por %p64, %p65
      %p67 = scmp.ne.s32.totalorder %s56, %s57
      %p68 = scmp.eq.s32.totalorder %s22, 0
      %p69 = por %p67, %p68
      %p70 = scmp.ne.s32.totalorder %s56, %s57
      %p71 = scmp.eq.s32.totalorder %s23, 3
      %p72 = por %p70, %p71
      %p74 = scmp.ne.s32.totalorder %s57, %s73
      %p75 = scmp.eq.s32.totalorder %s23, 0
      %p76 = por %p74, %p75
      %s77 = ssub.s32 %s17, %s24
      %p78 = scmp.eq.s32.totalorder %s77, 0
      %s80 = sadd.s32 %s79, 1
      %s81 = scalar_select %p78, %s79, %s80
      %p84 = pneg %p78
      %p85 = scmp.eq.s32.totalorder %s17, 3
      %p86 = por %p84, %p85
      %p87 = scmp.ne.s32.totalorder %s79, %s82
      %p88 = scmp.eq.s32.totalorder %s17, 0
      %p89 = por %p87, %p88
      %p90 = scmp.ne.s32.totalorder %s79, %s82
      %p91 = scmp.eq.s32.totalorder %s22, 3
      %p92 = por %p90, %p91
      %p93 = scmp.ne.s32.totalorder %s82, %s83
      %p94 = scmp.eq.s32.totalorder %s22, 0
      %p95 = por %p93, %p94
      %p96 = scmp.ne.s32.totalorder %s82, %s83
      %p97 = scmp.eq.s32.totalorder %s23, 3
      %p98 = por %p96, %p97
      %p100 = scmp.ne.s32.totalorder %s83, %s99
      %p101 = scmp.eq.s32.totalorder %s23, 0
      %p102 = por %p100, %p101
      %p103 = scmp.le.s32.totalorder 1, %s17
      %p104 = scmp.lt.s32.totalorder %s17, 5
      %p105 = pnand %p103, %p104
      %p106 = pneg %p105
      // Predicated region
      $region9: #{ssim.1} parent=5 // pred_check
        _
      $region10: #{ssim.1} parent=5 // pred_check_branch
        %108 = sbr.rel (%p105) target = $region12
      $region11: #{ssim.1} parent=5 // pred_region
        %s109 = ssub.s32 %s17, 1
      $region12: #{ssim.1} parent=5 // pred_fallthru
        _
      %p110 = scmp.lt.s32.totalorder %s17, 4
      // Predicated region
      $region13: #{ssim.1} parent=5 // pred_check
        %p111 = pneg %p110
      $region14: #{ssim.1} parent=5 // pred_check_branch
        %113 = sbr.rel (%p111) target = $region16
      $region15: #{ssim.1} parent=5 // pred_region
        // Predicated region
        $region17: #{ssim.1} parent=15 // pred_check
          %p114 = pneg %p37
        $region18: #{ssim.1} parent=15 // pred_check_branch
          %116 = sbr.rel (%p114) target = $region20
        $region19: #{ssim.1} parent=15 // pred_region
          %s117 = sand.u32 %s27, 1
          %s118 = scalar_lea.sflag [#allocation4], %s117
          %s119 = sand.u32 %s27, 1
          %s120 = smul.addr %s119, 32
          %s121 = scalar_lea.vmem [#allocation3], %s120
          %s122 = smul.u32 2, %s17
          %s124 = ssub.s32 512, 512
          %125 = vsyncadd %s118, %s124
          %s126 = smul.addr %s122, 2
          %s127 = smul.addr %s126, 128
          %s128 = scalar_lea.hbm %s0, %s127
          %s129 = sshll.u32 %s121, 4
          %s130 = int_to_ptr.vmem [resolvable:$true] %s129
          %135 = dma.hbm_to_vmem [thread:$0]  %s128, 512, %s130, %s118, 128, 128, 8
        $region20: #{ssim.1} parent=15 // pred_fallthru
          _
        // Predicated region
        $region21: #{ssim.1} parent=15 // pred_check
          %p136 = pneg %p63
        $region22: #{ssim.1} parent=15 // pred_check_branch
          %138 = sbr.rel (%p136) target = $region24
        $region23: #{ssim.1} parent=15 // pred_region
          %s139 = sand.u32 %s53, 1
          %s140 = scalar_lea.sflag [#allocation7], %s139
          %s141 = sand.u32 %s53, 1
          %s142 = smul.addr %s141, 32
          %s143 = scalar_lea.vmem [#allocation6], %s142
          %s144 = smul.u32 2, %s17
          %s146 = ssub.s32 512, 512
          %147 = vsyncadd %s140, %s146
          %s148 = smul.addr %s144, 2
          %s149 = smul.addr %s148, 128
          %s150 = scalar_lea.hbm %s1, %s149
          %s151 = sshll.u32 %s143, 4
          %s152 = int_to_ptr.vmem [resolvable:$true] %s151
          %157 = dma.hbm_to_vmem [thread:$0]  %s150, 512, %s152, %s140, 128, 128, 8
        $region24: #{ssim.1} parent=15 // pred_fallthru
          _
      $region16: #{ssim.1} parent=5 // pred_fallthru
        _
      %p158 = scmp.le.s32.totalorder 1, %s17
      %p159 = scmp.lt.s32.totalorder %s17, 5
      %p160 = pnand %p158, %p159
      %p161 = pneg %p160
      // Predicated region
      $region25: #{ssim.1} parent=5 // pred_check
        _
      $region26: #{ssim.1} parent=5 // pred_check_branch
        %163 = sbr.rel (%p160) target = $region28
      $region27: #{ssim.1} parent=5 // pred_region
        %s164 = ssub.s32 %s17, 1
        %s165 = sand.u32 %s30, 1
        %s166 = scalar_lea.sflag [#allocation4], %s165
        %s167 = sand.u32 %s30, 1
        %s168 = smul.addr %s167, 32
        %s169 = scalar_lea.vmem [#allocation3], %s168
        // Predicated region
        $region29: #{ssim.1} parent=27 // pred_check
          %p170 = pneg %p43
        $region30: #{ssim.1} parent=27 // pred_check_branch
          %172 = sbr.rel (%p170) target = $region32
        $region31: #{ssim.1} parent=27 // pred_region
          %173 = dma.done %s166, 512
        $region32: #{ssim.1} parent=27 // pred_fallthru
          _
        %s174 = sand.u32 %s56, 1
        %s175 = scalar_lea.sflag [#allocation7], %s174
        %s176 = sand.u32 %s56, 1
        %s177 = smul.addr %s176, 32
        %s178 = scalar_lea.vmem [#allocation6], %s177
        // Predicated region
        $region33: #{ssim.1} parent=27 // pred_check
          %p179 = pneg %p69
        $region34: #{ssim.1} parent=27 // pred_check_branch
          %181 = sbr.rel (%p179) target = $region36
        $region35: #{ssim.1} parent=27 // pred_region
          %182 = dma.done %s175, 512
        $region36: #{ssim.1} parent=27 // pred_fallthru
          _
        %s183 = sand.u32 %s30, 1
        %s184 = scalar_lea.sflag [#allocation4], %s183
        %s185 = sand.u32 %s30, 1
        %s186 = smul.addr %s185, 32
        %s187 = scalar_lea.vmem [#allocation3], %s186
        %p188 = pneg %p43
        %p189 = pneg %p40
        %s190 = sand.u32 %s56, 1
        %s191 = scalar_lea.sflag [#allocation7], %s190
        %s192 = sand.u32 %s56, 1
        %s193 = smul.addr %s192, 32
        %s194 = scalar_lea.vmem [#allocation6], %s193
        %p195 = pneg %p69
        %p196 = pneg %p66
        %p197 = pneg %p95
        %p198 = pneg %p92
        %s199 = sand.u32 %s82, 1
        %s200 = scalar_lea.sflag [#allocation5], %s199
        %s201 = sand.u32 %s82, 1
        %s202 = smul.addr %s201, 32
        %s203 = scalar_lea.vmem [#allocation8], %s202
        %s204 = smul.u32 2, %s22
        %s205 = smul.u32 2, %s22
        %s206 = smul.u32 2, %s22
        %v207 = vld [vmem:[%s169] sm:$0xff]
        %v208 = vld [vmem:[%s169 + $0x8] sm:$0xff]
        %v209 = vld [vmem:[%s169 + $0x10] sm:$0xff]
        %v210 = vld [vmem:[%s169 + $0x18] sm:$0xff]
        %v211 = vld [vmem:[%s178] sm:$0xff]
        %v212 = vld [vmem:[%s178 + $0x8] sm:$0xff]
        %v213 = vld [vmem:[%s178 + $0x10] sm:$0xff]
        %v214 = vld [vmem:[%s178 + $0x18] sm:$0xff]
        %v215 = vmul.f32 %v207, %v211
        %v216 = vmul.f32 %v208, %v212
        %v217 = vmul.f32 %v209, %v213
        %v218 = vmul.f32 %v210, %v214
        %223 = vrot.lane.b32.xlu0 %v215, 1
        %v224 = vpop.permute.xlu0 %223
        %225 = vrot.lane.b32.xlu0 %v216, 1
        %v226 = vpop.permute.xlu0 %225
        %227 = vrot.lane.b32.xlu0 %v217, 1
        %v228 = vpop.permute.xlu0 %227
        %229 = vrot.lane.b32.xlu0 %v218, 1
        %v230 = vpop.permute.xlu0 %229
        %vm235 = vcmask 138248
        %236 = vst.msk [vmem:[#allocation2 + $0x1] sm:$0xff] %vm235, %v224
        %237 = vst.msk [vmem:[#allocation2 + $0x9] sm:$0xff] %vm235, %v226
        %238 = vst.msk [vmem:[#allocation2 + $0x19] sm:$0xff] %vm235, %v228
        %239 = vst.msk [vmem:[#allocation2 + $0x21] sm:$0xff] %vm235, %v230
        %240 = vrot.lane.b32.xlu0 %v215, 127
        %v241 = vpop.permute.xlu0 %240
        %242 = vrot.lane.b32.xlu0 %v216, 127
        %v243 = vpop.permute.xlu0 %242
        %244 = vrot.lane.b32.xlu0 %v217, 127
        %v245 = vpop.permute.xlu0 %244
        %246 = vrot.lane.b32.xlu0 %v218, 127
        %v247 = vpop.permute.xlu0 %246
        %vm252 = vcmask 7168
        %253 = vst.msk [vmem:[#allocation2 + $0x1] sm:$0xff] %vm252, %v241
        %254 = vst.msk [vmem:[#allocation2 + $0x9] sm:$0xff] %vm252, %v243
        %255 = vst.msk [vmem:[#allocation2 + $0x19] sm:$0xff] %vm252, %v245
        %256 = vst.msk [vmem:[#allocation2 + $0x21] sm:$0xff] %vm252, %v247
        %257 = vrot.lane.b32.xlu0 %v215, 3
        %v258 = vpop.permute.xlu0 %257
        %259 = vrot.lane.b32.xlu0 %v216, 3
        %v260 = vpop.permute.xlu0 %259
        %261 = vrot.lane.b32.xlu0 %v217, 3
        %v262 = vpop.permute.xlu0 %261
        %263 = vrot.lane.b32.xlu0 %v218, 3
        %v264 = vpop.permute.xlu0 %263
        %vm269 = vcmask 146568
        %270 = vst.msk [vmem:[#allocation2 + $0x1] sm:$0xff] %vm269, %v258
        %271 = vst.msk [vmem:[#allocation2 + $0x9] sm:$0xff] %vm269, %v260
        %272 = vst.msk [vmem:[#allocation2 + $0x19] sm:$0xff] %vm269, %v262
        %273 = vst.msk [vmem:[#allocation2 + $0x21] sm:$0xff] %vm269, %v264
        %v274 = vld [vmem:[#allocation2 + $0x2] sm:$0x1]
        %v275 = vld [vmem:[#allocation2 + $0x1a] sm:$0x1]
        %vm276 = vcmask 139264
        %277 = vst.msk [vmem:[#allocation2] sm:$0x1] %vm276, %v274
        %278 = vst.msk [vmem:[#allocation2 + $0x18] sm:$0x1] %vm276, %v275
        %v279 = vld [vmem:[#allocation2 + $0xf] sm:$0x1]
        %v280 = vld [vmem:[#allocation2 + $0x27] sm:$0x1]
        %281 = vst.msk [vmem:[#allocation2 + $0x11] sm:$0x1] %vm276, %v279
        %282 = vst.msk [vmem:[#allocation2 + $0x29] sm:$0x1] %vm276, %v280
        %v283 = vld [vmem:[#allocation2] sm:$0xff]
        %v284 = vld [vmem:[#allocation2 + $0x8] sm:$0xff]
        %v285 = vld [vmem:[#allocation2 + $0x10] sm:$0x3]
        %v286 = vld [vmem:[#allocation2 + $0x18] sm:$0xff]
        %v287 = vld [vmem:[#allocation2 + $0x20] sm:$0xff]
        %v288 = vld [vmem:[#allocation2 + $0x28] sm:$0x3]
        %295 = vrot.lane.b32.xlu0 %v283, 127
        %v296 = vpop.permute.xlu0 %295
        %297 = vrot.lane.b32.xlu0 %v284, 127
        %v298 = vpop.permute.xlu0 %297
        %299 = vrot.lane.b32.xlu0 %v285, 127
        %v300 = vpop.permute.xlu0 %299
        %301 = vrot.lane.b32.xlu0 %v286, 127
        %v302 = vpop.permute.xlu0 %301
        %303 = vrot.lane.b32.xlu0 %v287, 127
        %v304 = vpop.permute.xlu0 %303
        %305 = vrot.lane.b32.xlu0 %v288, 127
        %v306 = vpop.permute.xlu0 %305
        %v313 = vadd.f32 %v283, %v296
        %v314 = vadd.f32 %v284, %v298
        %v315 = vadd.f32 %v285, %v300
        %v316 = vadd.f32 %v286, %v302
        %v317 = vadd.f32 %v287, %v304
        %v318 = vadd.f32 %v288, %v306
        %319 = vrot.lane.b32.xlu0 %v283, 126
        %v320 = vpop.permute.xlu0 %319
        %321 = vrot.lane.b32.xlu0 %v284, 126
        %v322 = vpop.permute.xlu0 %321
        %323 = vrot.lane.b32.xlu0 %v285, 126
        %v324 = vpop.permute.xlu0 %323
        %325 = vrot.lane.b32.xlu0 %v286, 126
        %v326 = vpop.permute.xlu0 %325
        %327 = vrot.lane.b32.xlu0 %v287, 126
        %v328 = vpop.permute.xlu0 %327
        %329 = vrot.lane.b32.xlu0 %v288, 126
        %v330 = vpop.permute.xlu0 %329
        %v337 = vadd.f32 %v313, %v320
        %v338 = vadd.f32 %v314, %v322
        %v339 = vadd.f32 %v315, %v324
        %v340 = vadd.f32 %v316, %v326
        %v341 = vadd.f32 %v317, %v328
        %v342 = vadd.f32 %v318, %v330
        %vm349 = vcmask 1046528
        %v350 = vrot.slane %v337, 1
        %v351 = vrot.slane %v338, 1
        %v352 = vsel %vm349, %v350, %v351
        %v353 = vrot.slane %v339, 1
        %v354 = vsel %vm349, %v351, %v353
        %v355 = vrot.slane %v340, 1
        %v356 = vrot.slane %v341, 1
        %v357 = vsel %vm349, %v355, %v356
        %v358 = vrot.slane %v342, 1
        %v359 = vsel %vm349, %v356, %v358
        %v364 = vadd.f32 %v337, %v352
        %v365 = vadd.f32 %v338, %v354
        %v366 = vadd.f32 %v340, %v357
        %v367 = vadd.f32 %v341, %v359
        %vm368 = vcmask 1045504
        %v369 = vrot.slane %v337, 2
        %v370 = vrot.slane %v338, 2
        %v371 = vsel %vm368, %v369, %v370
        %v372 = vrot.slane %v339, 2
        %v373 = vsel %vm368, %v370, %v372
        %v374 = vrot.slane %v340, 2
        %v375 = vrot.slane %v341, 2
        %v376 = vsel %vm368, %v374, %v375
        %v377 = vrot.slane %v342, 2
        %v378 = vsel %vm368, %v375, %v377
        %v383 = vadd.f32 %v364, %v371
        %v384 = vadd.f32 %v365, %v373
        %v385 = vadd.f32 %v366, %v376
        %v386 = vadd.f32 %v367, %v378
        %v387 = vmul.f32 %v207, %v207
        %v388 = vmul.f32 %v208, %v208
        %v389 = vmul.f32 %v209, %v209
        %v390 = vmul.f32 %v210, %v210
        %v391 = vmul.f32 %v211, %v211
        %v392 = vmul.f32 %v212, %v212
        %v393 = vmul.f32 %v213, %v213
        %v394 = vmul.f32 %v214, %v214
        %v395 = vadd.f32 %v387, %v391
        %v396 = vadd.f32 %v388, %v392
        %v397 = vadd.f32 %v389, %v393
        %v398 = vadd.f32 %v390, %v394
        %403 = vrot.lane.b32.xlu0 %v395, 1
        %v404 = vpop.permute.xlu0 %403
        %405 = vrot.lane.b32.xlu0 %v396, 1
        %v406 = vpop.permute.xlu0 %405
        %407 = vrot.lane.b32.xlu0 %v397, 1
        %v408 = vpop.permute.xlu0 %407
        %409 = vrot.lane.b32.xlu0 %v398, 1
        %v410 = vpop.permute.xlu0 %409
        %415 = vst.msk [vmem:[#allocation2 + $0x1] sm:$0xff] %vm235, %v404
        %416 = vst.msk [vmem:[#allocation2 + $0x9] sm:$0xff] %vm235, %v406
        %417 = vst.msk [vmem:[#allocation2 + $0x19] sm:$0xff] %vm235, %v408
        %418 = vst.msk [vmem:[#allocation2 + $0x21] sm:$0xff] %vm235, %v410
        %419 = vrot.lane.b32.xlu0 %v395, 127
        %v420 = vpop.permute.xlu0 %419
        %421 = vrot.lane.b32.xlu0 %v396, 127
        %v422 = vpop.permute.xlu0 %421
        %423 = vrot.lane.b32.xlu0 %v397, 127
        %v424 = vpop.permute.xlu0 %423
        %425 = vrot.lane.b32.xlu0 %v398, 127
        %v426 = vpop.permute.xlu0 %425
        %431 = vst.msk [vmem:[#allocation2 + $0x1] sm:$0xff] %vm252, %v420
        %432 = vst.msk [vmem:[#allocation2 + $0x9] sm:$0xff] %vm252, %v422
        %433 = vst.msk [vmem:[#allocation2 + $0x19] sm:$0xff] %vm252, %v424
        %434 = vst.msk [vmem:[#allocation2 + $0x21] sm:$0xff] %vm252, %v426
        %435 = vrot.lane.b32.xlu0 %v395, 3
        %v436 = vpop.permute.xlu0 %435
        %437 = vrot.lane.b32.xlu0 %v396, 3
        %v438 = vpop.permute.xlu0 %437
        %439 = vrot.lane.b32.xlu0 %v397, 3
        %v440 = vpop.permute.xlu0 %439
        %441 = vrot.lane.b32.xlu0 %v398, 3
        %v442 = vpop.permute.xlu0 %441
        %447 = vst.msk [vmem:[#allocation2 + $0x1] sm:$0xff] %vm269, %v436
        %448 = vst.msk [vmem:[#allocation2 + $0x9] sm:$0xff] %vm269, %v438
        %449 = vst.msk [vmem:[#allocation2 + $0x19] sm:$0xff] %vm269, %v440
        %450 = vst.msk [vmem:[#allocation2 + $0x21] sm:$0xff] %vm269, %v442
        %v451 = vld [vmem:[#allocation2 + $0x2] sm:$0x1]
        %v452 = vld [vmem:[#allocation2 + $0x1a] sm:$0x1]
        %453 = vst.msk [vmem:[#allocation2] sm:$0x1] %vm276, %v451
        %454 = vst.msk [vmem:[#allocation2 + $0x18] sm:$0x1] %vm276, %v452
        %v455 = vld [vmem:[#allocation2 + $0xf] sm:$0x1]
        %v456 = vld [vmem:[#allocation2 + $0x27] sm:$0x1]
        %457 = vst.msk [vmem:[#allocation2 + $0x11] sm:$0x1] %vm276, %v455
        %458 = vst.msk [vmem:[#allocation2 + $0x29] sm:$0x1] %vm276, %v456
        %v459 = vld [vmem:[#allocation2] sm:$0xff]
        %v460 = vld [vmem:[#allocation2 + $0x8] sm:$0xff]
        %v461 = vld [vmem:[#allocation2 + $0x10] sm:$0x3]
        %v462 = vld [vmem:[#allocation2 + $0x18] sm:$0xff]
        %v463 = vld [vmem:[#allocation2 + $0x20] sm:$0xff]
        %v464 = vld [vmem:[#allocation2 + $0x28] sm:$0x3]
        %471 = vrot.lane.b32.xlu0 %v459, 127
        %v472 = vpop.permute.xlu0 %471
        %473 = vrot.lane.b32.xlu0 %v460, 127
        %v474 = vpop.permute.xlu0 %473
        %475 = vrot.lane.b32.xlu0 %v461, 127
        %v476 = vpop.permute.xlu0 %475
        %477 = vrot.lane.b32.xlu0 %v462, 127
        %v478 = vpop.permute.xlu0 %477
        %479 = vrot.lane.b32.xlu0 %v463, 127
        %v480 = vpop.permute.xlu0 %479
        %481 = vrot.lane.b32.xlu0 %v464, 127
        %v482 = vpop.permute.xlu0 %481
        %v489 = vadd.f32 %v459, %v472
        %v490 = vadd.f32 %v460, %v474
        %v491 = vadd.f32 %v461, %v476
        %v492 = vadd.f32 %v462, %v478
        %v493 = vadd.f32 %v463, %v480
        %v494 = vadd.f32 %v464, %v482
        %495 = vrot.lane.b32.xlu0 %v459, 126
        %v496 = vpop.permute.xlu0 %495
        %497 = vrot.lane.b32.xlu0 %v460, 126
        %v498 = vpop.permute.xlu0 %497
        %499 = vrot.lane.b32.xlu0 %v461, 126
        %v500 = vpop.permute.xlu0 %499
        %501 = vrot.lane.b32.xlu0 %v462, 126
        %v502 = vpop.permute.xlu0 %501
        %503 = vrot.lane.b32.xlu0 %v463, 126
        %v504 = vpop.permute.xlu0 %503
        %505 = vrot.lane.b32.xlu0 %v464, 126
        %v506 = vpop.permute.xlu0 %505
        %v513 = vadd.f32 %v489, %v496
        %v514 = vadd.f32 %v490, %v498
        %v515 = vadd.f32 %v491, %v500
        %v516 = vadd.f32 %v492, %v502
        %v517 = vadd.f32 %v493, %v504
        %v518 = vadd.f32 %v494, %v506
        %v525 = vrot.slane %v513, 1
        %v526 = vrot.slane %v514, 1
        %v527 = vsel %vm349, %v525, %v526
        %v528 = vrot.slane %v515, 1
        %v529 = vsel %vm349, %v526, %v528
        %v530 = vrot.slane %v516, 1
        %v531 = vrot.slane %v517, 1
        %v532 = vsel %vm349, %v530, %v531
        %v533 = vrot.slane %v518, 1
        %v534 = vsel %vm349, %v531, %v533
        %v539 = vadd.f32 %v513, %v527
        %v540 = vadd.f32 %v514, %v529
        %v541 = vadd.f32 %v516, %v532
        %v542 = vadd.f32 %v517, %v534
        %v543 = vrot.slane %v513, 2
        %v544 = vrot.slane %v514, 2
        %v545 = vsel %vm368, %v543, %v544
        %v546 = vrot.slane %v515, 2
        %v547 = vsel %vm368, %v544, %v546
        %v548 = vrot.slane %v516, 2
        %v549 = vrot.slane %v517, 2
        %v550 = vsel %vm368, %v548, %v549
        %v551 = vrot.slane %v518, 2
        %v552 = vsel %vm368, %v549, %v551
        %v557 = vadd.f32 %v539, %v545
        %v558 = vadd.f32 %v540, %v547
        %v559 = vadd.f32 %v541, %v550
        %v560 = vadd.f32 %v542, %v552
        %565 = vrot.lane.b32.xlu0 %v207, 1
        %v566 = vpop.permute.xlu0 %565
        %567 = vrot.lane.b32.xlu0 %v208, 1
        %v568 = vpop.permute.xlu0 %567
        %569 = vrot.lane.b32.xlu0 %v209, 1
        %v570 = vpop.permute.xlu0 %569
        %571 = vrot.lane.b32.xlu0 %v210, 1
        %v572 = vpop.permute.xlu0 %571
        %577 = vst.msk [vmem:[#allocation2 + $0x1] sm:$0xff] %vm235, %v566
        %578 = vst.msk [vmem:[#allocation2 + $0x9] sm:$0xff] %vm235, %v568
        %579 = vst.msk [vmem:[#allocation2 + $0x19] sm:$0xff] %vm235, %v570
        %580 = vst.msk [vmem:[#allocation2 + $0x21] sm:$0xff] %vm235, %v572
        %581 = vrot.lane.b32.xlu0 %v207, 127
        %v582 = vpop.permute.xlu0 %581
        %583 = vrot.lane.b32.xlu0 %v208, 127
        %v584 = vpop.permute.xlu0 %583
        %585 = vrot.lane.b32.xlu0 %v209, 127
        %v586 = vpop.permute.xlu0 %585
        %587 = vrot.lane.b32.xlu0 %v210, 127
        %v588 = vpop.permute.xlu0 %587
        %593 = vst.msk [vmem:[#allocation2 + $0x1] sm:$0xff] %vm252, %v582
        %594 = vst.msk [vmem:[#allocation2 + $0x9] sm:$0xff] %vm252, %v584
        %595 = vst.msk [vmem:[#allocation2 + $0x19] sm:$0xff] %vm252, %v586
        %596 = vst.msk [vmem:[#allocation2 + $0x21] sm:$0xff] %vm252, %v588
        %597 = vrot.lane.b32.xlu0 %v207, 3
        %v598 = vpop.permute.xlu0 %597
        %599 = vrot.lane.b32.xlu0 %v208, 3
        %v600 = vpop.permute.xlu0 %599
        %601 = vrot.lane.b32.xlu0 %v209, 3
        %v602 = vpop.permute.xlu0 %601
        %603 = vrot.lane.b32.xlu0 %v210, 3
        %v604 = vpop.permute.xlu0 %603
        %609 = vst.msk [vmem:[#allocation2 + $0x1] sm:$0xff] %vm269, %v598
        %610 = vst.msk [vmem:[#allocation2 + $0x9] sm:$0xff] %vm269, %v600
        %611 = vst.msk [vmem:[#allocation2 + $0x19] sm:$0xff] %vm269, %v602
        %612 = vst.msk [vmem:[#allocation2 + $0x21] sm:$0xff] %vm269, %v604
        %v613 = vld [vmem:[#allocation2 + $0x2] sm:$0x1]
        %v614 = vld [vmem:[#allocation2 + $0x1a] sm:$0x1]
        %615 = vst.msk [vmem:[#allocation2] sm:$0x1] %vm276, %v613
        %616 = vst.msk [vmem:[#allocation2 + $0x18] sm:$0x1] %vm276, %v614
        %v617 = vld [vmem:[#allocation2 + $0xf] sm:$0x1]
        %v618 = vld [vmem:[#allocation2 + $0x27] sm:$0x1]
        %619 = vst.msk [vmem:[#allocation2 + $0x11] sm:$0x1] %vm276, %v617
        %620 = vst.msk [vmem:[#allocation2 + $0x29] sm:$0x1] %vm276, %v618
        %v621 = vld [vmem:[#allocation2] sm:$0xff]
        %v622 = vld [vmem:[#allocation2 + $0x8] sm:$0xff]
        %v623 = vld [vmem:[#allocation2 + $0x10] sm:$0x3]
        %v624 = vld [vmem:[#allocation2 + $0x18] sm:$0xff]
        %v625 = vld [vmem:[#allocation2 + $0x20] sm:$0xff]
        %v626 = vld [vmem:[#allocation2 + $0x28] sm:$0x3]
        %633 = vrot.lane.b32.xlu0 %v621, 127
        %v634 = vpop.permute.xlu0 %633
        %635 = vrot.lane.b32.xlu0 %v622, 127
        %v636 = vpop.permute.xlu0 %635
        %637 = vrot.lane.b32.xlu0 %v623, 127
        %v638 = vpop.permute.xlu0 %637
        %639 = vrot.lane.b32.xlu0 %v624, 127
        %v640 = vpop.permute.xlu0 %639
        %641 = vrot.lane.b32.xlu0 %v625, 127
        %v642 = vpop.permute.xlu0 %641
        %643 = vrot.lane.b32.xlu0 %v626, 127
        %v644 = vpop.permute.xlu0 %643
        %v651 = vadd.f32 %v621, %v634
        %v652 = vadd.f32 %v622, %v636
        %v653 = vadd.f32 %v623, %v638
        %v654 = vadd.f32 %v624, %v640
        %v655 = vadd.f32 %v625, %v642
        %v656 = vadd.f32 %v626, %v644
        %657 = vrot.lane.b32.xlu0 %v621, 126
        %v658 = vpop.permute.xlu0 %657
        %659 = vrot.lane.b32.xlu0 %v622, 126
        %v660 = vpop.permute.xlu0 %659
        %661 = vrot.lane.b32.xlu0 %v623, 126
        %v662 = vpop.permute.xlu0 %661
        %663 = vrot.lane.b32.xlu0 %v624, 126
        %v664 = vpop.permute.xlu0 %663
        %665 = vrot.lane.b32.xlu0 %v625, 126
        %v666 = vpop.permute.xlu0 %665
        %667 = vrot.lane.b32.xlu0 %v626, 126
        %v668 = vpop.permute.xlu0 %667
        %v675 = vadd.f32 %v651, %v658
        %v676 = vadd.f32 %v652, %v660
        %v677 = vadd.f32 %v653, %v662
        %v678 = vadd.f32 %v654, %v664
        %v679 = vadd.f32 %v655, %v666
        %v680 = vadd.f32 %v656, %v668
        %v687 = vrot.slane %v675, 1
        %v688 = vrot.slane %v676, 1
        %v689 = vsel %vm349, %v687, %v688
        %v690 = vrot.slane %v677, 1
        %v691 = vsel %vm349, %v688, %v690
        %v692 = vrot.slane %v678, 1
        %v693 = vrot.slane %v679, 1
        %v694 = vsel %vm349, %v692, %v693
        %v695 = vrot.slane %v680, 1
        %v696 = vsel %vm349, %v693, %v695
        %v701 = vadd.f32 %v675, %v689
        %v702 = vadd.f32 %v676, %v691
        %v703 = vadd.f32 %v678, %v694
        %v704 = vadd.f32 %v679, %v696
        %v705 = vrot.slane %v675, 2
        %v706 = vrot.slane %v676, 2
        %v707 = vsel %vm368, %v705, %v706
        %v708 = vrot.slane %v677, 2
        %v709 = vsel %vm368, %v706, %v708
        %v710 = vrot.slane %v678, 2
        %v711 = vrot.slane %v679, 2
        %v712 = vsel %vm368, %v710, %v711
        %v713 = vrot.slane %v680, 2
        %v714 = vsel %vm368, %v711, %v713
        %v719 = vadd.f32 %v701, %v707
        %v720 = vadd.f32 %v702, %v709
        %v721 = vadd.f32 %v703, %v712
        %v722 = vadd.f32 %v704, %v714
        %727 = vrot.lane.b32.xlu0 %v211, 1
        %v728 = vpop.permute.xlu0 %727
        %729 = vrot.lane.b32.xlu0 %v212, 1
        %v730 = vpop.permute.xlu0 %729
        %731 = vrot.lane.b32.xlu0 %v213, 1
        %v732 = vpop.permute.xlu0 %731
        %733 = vrot.lane.b32.xlu0 %v214, 1
        %v734 = vpop.permute.xlu0 %733
        %739 = vst.msk [vmem:[#allocation2 + $0x1] sm:$0xff] %vm235, %v728
        %740 = vst.msk [vmem:[#allocation2 + $0x9] sm:$0xff] %vm235, %v730
        %741 = vst.msk [vmem:[#allocation2 + $0x19] sm:$0xff] %vm235, %v732
        %742 = vst.msk [vmem:[#allocation2 + $0x21] sm:$0xff] %vm235, %v734
        %743 = vrot.lane.b32.xlu0 %v211, 127
        %v744 = vpop.permute.xlu0 %743
        %745 = vrot.lane.b32.xlu0 %v212, 127
        %v746 = vpop.permute.xlu0 %745
        %747 = vrot.lane.b32.xlu0 %v213, 127
        %v748 = vpop.permute.xlu0 %747
        %749 = vrot.lane.b32.xlu0 %v214, 127
        %v750 = vpop.permute.xlu0 %749
        %755 = vst.msk [vmem:[#allocation2 + $0x1] sm:$0xff] %vm252, %v744
        %756 = vst.msk [vmem:[#allocation2 + $0x9] sm:$0xff] %vm252, %v746
        %757 = vst.msk [vmem:[#allocation2 + $0x19] sm:$0xff] %vm252, %v748
        %758 = vst.msk [vmem:[#allocation2 + $0x21] sm:$0xff] %vm252, %v750
        %759 = vrot.lane.b32.xlu0 %v211, 3
        %v760 = vpop.permute.xlu0 %759
        %761 = vrot.lane.b32.xlu0 %v212, 3
        %v762 = vpop.permute.xlu0 %761
        %763 = vrot.lane.b32.xlu0 %v213, 3
        %v764 = vpop.permute.xlu0 %763
        %765 = vrot.lane.b32.xlu0 %v214, 3
        %v766 = vpop.permute.xlu0 %765
        %771 = vst.msk [vmem:[#allocation2 + $0x1] sm:$0xff] %vm269, %v760
        %772 = vst.msk [vmem:[#allocation2 + $0x9] sm:$0xff] %vm269, %v762
        %773 = vst.msk [vmem:[#allocation2 + $0x19] sm:$0xff] %vm269, %v764
        %774 = vst.msk [vmem:[#allocation2 + $0x21] sm:$0xff] %vm269, %v766
        %v775 = vld [vmem:[#allocation2 + $0x2] sm:$0x1]
        %v776 = vld [vmem:[#allocation2 + $0x1a] sm:$0x1]
        %777 = vst.msk [vmem:[#allocation2] sm:$0x1] %vm276, %v775
        %778 = vst.msk [vmem:[#allocation2 + $0x18] sm:$0x1] %vm276, %v776
        %v779 = vld [vmem:[#allocation2 + $0xf] sm:$0x1]
        %v780 = vld [vmem:[#allocation2 + $0x27] sm:$0x1]
        %781 = vst.msk [vmem:[#allocation2 + $0x11] sm:$0x1] %vm276, %v779
        %782 = vst.msk [vmem:[#allocation2 + $0x29] sm:$0x1] %vm276, %v780
        %v783 = vld [vmem:[#allocation2] sm:$0xff]
        %v784 = vld [vmem:[#allocation2 + $0x8] sm:$0xff]
        %v785 = vld [vmem:[#allocation2 + $0x10] sm:$0x3]
        %v786 = vld [vmem:[#allocation2 + $0x18] sm:$0xff]
        %v787 = vld [vmem:[#allocation2 + $0x20] sm:$0xff]
        %v788 = vld [vmem:[#allocation2 + $0x28] sm:$0x3]
        %795 = vrot.lane.b32.xlu0 %v783, 127
        %v796 = vpop.permute.xlu0 %795
        %797 = vrot.lane.b32.xlu0 %v784, 127
        %v798 = vpop.permute.xlu0 %797
        %799 = vrot.lane.b32.xlu0 %v785, 127
        %v800 = vpop.permute.xlu0 %799
        %801 = vrot.lane.b32.xlu0 %v786, 127
        %v802 = vpop.permute.xlu0 %801
        %803 = vrot.lane.b32.xlu0 %v787, 127
        %v804 = vpop.permute.xlu0 %803
        %805 = vrot.lane.b32.xlu0 %v788, 127
        %v806 = vpop.permute.xlu0 %805
        %v813 = vadd.f32 %v783, %v796
        %v814 = vadd.f32 %v784, %v798
        %v815 = vadd.f32 %v785, %v800
        %v816 = vadd.f32 %v786, %v802
        %v817 = vadd.f32 %v787, %v804
        %v818 = vadd.f32 %v788, %v806
        %819 = vrot.lane.b32.xlu0 %v783, 126
        %v820 = vpop.permute.xlu0 %819
        %821 = vrot.lane.b32.xlu0 %v784, 126
        %v822 = vpop.permute.xlu0 %821
        %823 = vrot.lane.b32.xlu0 %v785, 126
        %v824 = vpop.permute.xlu0 %823
        %825 = vrot.lane.b32.xlu0 %v786, 126
        %v826 = vpop.permute.xlu0 %825
        %827 = vrot.lane.b32.xlu0 %v787, 126
        %v828 = vpop.permute.xlu0 %827
        %829 = vrot.lane.b32.xlu0 %v788, 126
        %v830 = vpop.permute.xlu0 %829
        %v837 = vadd.f32 %v813, %v820
        %v838 = vadd.f32 %v814, %v822
        %v839 = vadd.f32 %v815, %v824
        %v840 = vadd.f32 %v816, %v826
        %v841 = vadd.f32 %v817, %v828
        %v842 = vadd.f32 %v818, %v830
        %v849 = vrot.slane %v837, 1
        %v850 = vrot.slane %v838, 1
        %v851 = vsel %vm349, %v849, %v850
        %v852 = vrot.slane %v839, 1
        %v853 = vsel %vm349, %v850, %v852
        %v854 = vrot.slane %v840, 1
        %v855 = vrot.slane %v841, 1
        %v856 = vsel %vm349, %v854, %v855
        %v857 = vrot.slane %v842, 1
        %v858 = vsel %vm349, %v855, %v857
        %v863 = vadd.f32 %v837, %v851
        %v864 = vadd.f32 %v838, %v853
        %v865 = vadd.f32 %v840, %v856
        %v866 = vadd.f32 %v841, %v858
        %v867 = vrot.slane %v837, 2
        %v868 = vrot.slane %v838, 2
        %v869 = vsel %vm368, %v867, %v868
        %v870 = vrot.slane %v839, 2
        %v871 = vsel %vm368, %v868, %v870
        %v872 = vrot.slane %v840, 2
        %v873 = vrot.slane %v841, 2
        %v874 = vsel %vm368, %v872, %v873
        %v875 = vrot.slane %v842, 2
        %v876 = vsel %vm368, %v873, %v875
        %v881 = vadd.f32 %v863, %v869
        %v882 = vadd.f32 %v864, %v871
        %v883 = vadd.f32 %v865, %v874
        %v884 = vadd.f32 %v866, %v876
        %v885 = vmul.f32 %v719, %v719
        %v886 = vmul.f32 %v720, %v720
        %v887 = vmul.f32 %v721, %v721
        %v888 = vmul.f32 %v722, %v722
        %v889 = vmul.f32 %v881, %v881
        %v890 = vmul.f32 %v882, %v882
        %v891 = vmul.f32 %v883, %v883
        %v892 = vmul.f32 %v884, %v884
        %v893 = vmul.f32 %v719, %v881
        %v894 = vmul.f32 %v720, %v882
        %v895 = vmul.f32 %v721, %v883
        %v896 = vmul.f32 %v722, %v884
        %v897 = vadd.f32 %v893, %v893
        %v898 = vadd.f32 %v894, %v894
        %v899 = vadd.f32 %v895, %v895
        %v900 = vadd.f32 %v896, %v896
        %v901 = vadd.f32 %v885, %v889
        %v902 = vadd.f32 %v886, %v890
        %v903 = vadd.f32 %v887, %v891
        %v904 = vadd.f32 %v888, %v892
        %v905 = vadd.f32 %v897, 0.0081
        %v906 = vadd.f32 %v898, 0.0081
        %v907 = vadd.f32 %v899, 0.0081
        %v908 = vadd.f32 %v900, 0.0081
        %v909 = vmul.f32 %v383, 18.0
        %v910 = vmul.f32 %v384, 18.0
        %v911 = vmul.f32 %v385, 18.0
        %v912 = vmul.f32 %v386, 18.0
        %v913 = vadd.f32 %v909, 0.0729
        %v914 = vadd.f32 %v910, 0.0729
        %v915 = vadd.f32 %v911, 0.0729
        %v916 = vadd.f32 %v912, 0.0729
        %v917 = vsub.f32 %v913, %v897
        %v918 = vsub.f32 %v914, %v898
        %v919 = vsub.f32 %v915, %v899
        %v920 = vsub.f32 %v916, %v900
        %v921 = vmul.f32 %v905, %v917
        %v922 = vmul.f32 %v906, %v918
        %v923 = vmul.f32 %v907, %v919
        %v924 = vmul.f32 %v908, %v920
        %v925 = vadd.f32 %v901, 0.0081
        %v926 = vadd.f32 %v902, 0.0081
        %v927 = vadd.f32 %v903, 0.0081
        %v928 = vadd.f32 %v904, 0.0081
        %v929 = vmul.f32 %v557, 9.0
        %v930 = vmul.f32 %v558, 9.0
        %v931 = vmul.f32 %v559, 9.0
        %v932 = vmul.f32 %v560, 9.0
        %v933 = vadd.f32 %v929, 0.0729
        %v934 = vadd.f32 %v930, 0.0729
        %v935 = vadd.f32 %v931, 0.0729
        %v936 = vadd.f32 %v932, 0.0729
        %v937 = vsub.f32 %v933, %v901
        %v938 = vsub.f32 %v934, %v902
        %v939 = vsub.f32 %v935, %v903
        %v940 = vsub.f32 %v936, %v904
        %v941 = vmul.f32 %v925, %v937
        %v942 = vmul.f32 %v926, %v938
        %v943 = vmul.f32 %v927, %v939
        %v944 = vmul.f32 %v928, %v940
        %v945 = vrcp.pop %v941
        %v946 = vmul.f32 %v921, %v945
        %v947 = vrcp.pop %v942
        %v948 = vmul.f32 %v922, %v947
        %v949 = vrcp.pop %v943
        %v950 = vmul.f32 %v923, %v949
        %v951 = vrcp.pop %v944
        %v952 = vmul.f32 %v924, %v951
        %v953 = vmul.f32 %v946, 0.5
        %v954 = vmul.f32 %v948, 0.5
        %v955 = vmul.f32 %v950, 0.5
        %v956 = vmul.f32 %v952, 0.5
        %v957 = vsub.f32 0.5, %v953
        %v958 = vsub.f32 0.5, %v954
        %v959 = vsub.f32 0.5, %v955
        %v960 = vsub.f32 0.5, %v956
        %v961 = vmax.f32 %v957, 0.0
        %v962 = vmax.f32 %v958, 0.0
        %v963 = vmax.f32 %v959, 0.0
        %v964 = vmax.f32 %v960, 0.0
        %v965 = vmin.f32 %v961, 1.0
        %v966 = vmin.f32 %v962, 1.0
        %v967 = vmin.f32 %v963, 1.0
        %v968 = vmin.f32 %v964, 1.0
        %vm969 = vcmask 130048
        %970 = vst.msk [vmem:[%s203] sm:$0xff] %vm969, %v965
        %971 = vst.msk [vmem:[%s203 + $0x8] sm:$0xff] %vm969, %v966
        %972 = vst.msk [vmem:[%s203 + $0x10] sm:$0xff] %vm969, %v967
        %973 = vst.msk [vmem:[%s203 + $0x18] sm:$0xff] %vm969, %v968
        %s974 = sand.u32 %s82, 1
        %s975 = scalar_lea.sflag [#allocation5], %s974
        %s976 = sand.u32 %s82, 1
        %s977 = smul.addr %s976, 32
        %s978 = scalar_lea.vmem [#allocation8], %s977
        // Predicated region
        $region37: #{ssim.1} parent=27 // pred_check
          %p979 = pneg %p92
        $region38: #{ssim.1} parent=27 // pred_check_branch
          %981 = sbr.rel (%p979) target = $region40
        $region39: #{ssim.1} parent=27 // pred_region
          %s982 = smul.u32 2, %s22
          %s984 = ssub.s32 512, 512
          %985 = vsyncadd %s975, %s984
          %s986 = smul.addr %s982, 2
          %s987 = smul.addr %s986, 128
          %s988 = scalar_lea.hbm %s2, %s987
          %s989 = sshll.u32 %s978, 4
          %s990 = int_to_ptr.vmem [resolvable:$true] %s989
          %995 = dma.vmem_to_hbm [thread:$0]  %s990, 512, %s988, %s975, 128, 128, 8
        $region40: #{ssim.1} parent=27 // pred_fallthru
          _
      $region28: #{ssim.1} parent=5 // pred_fallthru
        _
      %p996 = scmp.le.s32.totalorder 2, %s17
      // Predicated region
      $region41: #{ssim.1} parent=5 // pred_check
        %p997 = pneg %p996
      $region42: #{ssim.1} parent=5 // pred_check_branch
        %999 = sbr.rel (%p997) target = $region44
      $region43: #{ssim.1} parent=5 // pred_region
        %s1000 = ssub.s32 %s17, 2
        // Predicated region
        $region45: #{ssim.1} parent=43 // pred_check
          %p1001 = pneg %p98
        $region46: #{ssim.1} parent=43 // pred_check_branch
          %1003 = sbr.rel (%p1001) target = $region48
        $region47: #{ssim.1} parent=43 // pred_region
          %s1004 = sand.u32 %s83, 1
          %s1005 = scalar_lea.sflag [#allocation5], %s1004
          %s1006 = sand.u32 %s83, 1
          %s1007 = smul.addr %s1006, 32
          %s1008 = scalar_lea.vmem [#allocation8], %s1007
          %1009 = dma.done %s1005, 512
        $region48: #{ssim.1} parent=43 // pred_fallthru
          _
      $region44: #{ssim.1} parent=5 // pred_fallthru
        _
    $region6: #{ssim.1} parent=1 // loop_footer
      %s21 = sadd.s32 1, %s17
    $region7: #{ssim.1} parent=1 // loop_footer_branch
      %16 = sbr.rel target = $region3
    $region8: #{ssim.1} parent=1 // loop_exit
      _
    %1010 = vsyncpa [#allocation4], 1
    %s1011 = scalar_lea.sflag [#allocation4], 1
    %1012 = vsyncpa %s1011, 1
    %1013 = vsyncpa [#allocation7], 1
    %s1014 = scalar_lea.sflag [#allocation7], 1
    %1015 = vsyncpa %s1014, 1
    %1016 = vsyncpa [#allocation5], 1
    %s1017 = scalar_lea.sflag [#allocation5], 1
    %1018 = vsyncpa %s1017, 1

</llo_original>
